<compile_context>
chip_gen: v5e
topology: v5e:2x2
jax: 0.10.0
libtpu: 0.0.40
codegen_flags: <defaults>
</compile_context>

<pallas_src>
import functools
import math

import jax
import jax.numpy as jnp
from jax.experimental import pallas as pl
from jax.experimental.pallas import tpu as pltpu


# --------------------------------------------------------------------------
# Tile selection: largest divisor tiles that keep `n_streams` double-buffered
# (tb, tf) f32 tiles inside a conservative VMEM budget (safe on v5e/v6e/v7x
# default scoped-VMEM limits).
# --------------------------------------------------------------------------
def _choose_tiles(B, F, *, n_streams, itemsize=4, vmem_budget=8 * 1024 * 1024):
    tb_cands = [c for c in (256, 128, 64, 32, 16, 8) if B % c == 0] or [B]
    tf_cands = [c for c in (16384, 8192, 4096, 2048, 1024, 512, 256, 128)
                if F % c == 0] or [F]

    tf = tf_cands[0]
    # Shrink the lane-axis tile first if even the smallest batch tile overflows.
    while (2 * n_streams * tb_cands[-1] * tf * itemsize > vmem_budget
           and len(tf_cands) > 1):
        tf_cands = tf_cands[1:]
        tf = tf_cands[0]
    # Then take the largest batch tile that still fits.
    tb = tb_cands[-1]
    for cand in tb_cands:
        if 2 * n_streams * cand * tf * itemsize <= vmem_budget:
            tb = cand
            break
    return tb, tf


# --------------------------------------------------------------------------
# Kernel 1: flow-matching "encode" + target construction (elementwise hot path)
#   xt     = (1 - (1 - sigma_min) * t) * x + t * eps
#   target = eps - (1 - sigma_min) * x
# --------------------------------------------------------------------------
def _encode_kernel(sigma_min, t_ref, x_ref, eps_ref, xt_ref, target_ref):
    t = t_ref[...].astype(jnp.float32)                   # (tb, 1)
    x = x_ref[...].astype(jnp.float32)                   # (tb, tf)
    eps = eps_ref[...].astype(jnp.float32)               # (tb, tf)
    a = 1.0 - (1.0 - sigma_min) * t                      # (tb, 1) per-row scalar
    xt_ref[...] = (a * x + t * eps).astype(xt_ref.dtype)
    target_ref[...] = (eps - (1.0 - sigma_min) * x).astype(target_ref.dtype)


# --------------------------------------------------------------------------
# Kernel 2: per-sample MSE reduction over F (+ LogvarNet finalize)
#   grid = (B tiles [parallel], F tiles [arbitrary, last])
#   acc  = running sum_F (pred - target)^2              (VMEM scratch, f32)
#   at last F tile:
#     val    = acc / F
#     logvar = cos((freqs*t + phases)*2pi) @ w + b      (VPU mul + lane reduce)
#     out    = val * exp(-logvar) + logvar              (per-sample loss term)
# --------------------------------------------------------------------------
def _loss_kernel(learn_logvar, inv_F, t_ref, pred_ref, target_ref,
                 freqs_ref, phases_ref, w_ref, b_ref, out_ref, acc_ref):
    j = pl.program_id(1)

    @pl.when(j == 0)
    def _init():
        acc_ref[...] = jnp.zeros_like(acc_ref)

    diff = pred_ref[...].astype(jnp.float32) - target_ref[...].astype(jnp.float32)
    acc_ref[...] += jnp.sum(diff * diff, axis=-1, keepdims=True)     # (tb, 1)

    @pl.when(j == pl.num_programs(1) - 1)
    def _finalize():
        val = acc_ref[...] * inv_F                                   # (tb, 1)
        if learn_logvar:
            t = t_ref[...].astype(jnp.float32)                       # (tb, 1)
            emb = jnp.cos((freqs_ref[...] * t + phases_ref[...]) * (2.0 * jnp.pi))
            logvar = jnp.sum(emb * w_ref[...], axis=-1, keepdims=True) + b_ref[...]
            out_ref[...] = val * jnp.exp(-logvar) + logvar
        else:
            out_ref[...] = val


class FlowMatchingPallas:
    """JAX/Pallas re-implementation of FlowMatching.forward (training loss path)."""

    def __init__(self, key, sigma_min=0.0, learn_logvar=True, channels_logvar=64):
        self.sigma_min = float(sigma_min)
        self.learn_logvar = bool(learn_logvar)
        self.channels_logvar = int(channels_logvar)

        k1, k2, k3, k4 = jax.random.split(key, 4)
        # LogvarNet parameters (synthetic deterministic init; shapes match torch).
        self.freqs = jax.random.normal(k1, (1, channels_logvar), jnp.float32)
        self.phases = jax.random.uniform(k2, (1, channels_logvar), jnp.float32)
        bound = 1.0 / math.sqrt(channels_logvar)
        self.embed_w = jax.random.uniform(k3, (1, channels_logvar), jnp.float32,
                                          minval=-bound, maxval=bound)
        self.embed_b = jax.random.uniform(k4, (1, 1), jnp.float32,
                                          minval=-bound, maxval=bound)

    # ---- Pallas-backed pieces ------------------------------------------------
    def encode(self, x, t, eps):
        B = x.shape[0]
        F = math.prod(x.shape[1:])
        xf = x.reshape(B, F)                          # keep input dtype (no wrapper upcast)
        ef = eps.reshape(B, F).astype(x.dtype)
        t2 = t.reshape(B, 1).astype(jnp.float32)

        # 4 big streams: x, eps (in) + xt, target (out)
        tb, tf = _choose_tiles(B, F, n_streams=4,
                               itemsize=jnp.dtype(x.dtype).itemsize)
        nb, nf = B // tb, F // tf
        itemsize = jnp.dtype(x.dtype).itemsize
        cost = pl.CostEstimate(flops=5 * B * F, transcendentals=0,
                               bytes_accessed=4 * B * F * itemsize + 4 * B)

        xt, target = pl.pallas_call(
            functools.partial(_encode_kernel, self.sigma_min),
            grid=(nb, nf),
            out_shape=(jax.ShapeDtypeStruct((B, F), x.dtype),
                       jax.ShapeDtypeStruct((B, F), x.dtype)),
            in_specs=[pl.BlockSpec((tb, 1), lambda i, j: (i, 0)),
                      pl.BlockSpec((tb, tf), lambda i, j: (i, j)),
                      pl.BlockSpec((tb, tf), lambda i, j: (i, j))],
            out_specs=(pl.BlockSpec((tb, tf), lambda i, j: (i, j)),
                       pl.BlockSpec((tb, tf), lambda i, j: (i, j))),
            compiler_params=pltpu.CompilerParams(
                dimension_semantics=("parallel", "parallel")),
            cost_estimate=cost,
        )(t2, xf, ef)
        return xt.reshape(x.shape), target.reshape(x.shape)

    def _loss(self, t, pred, target):
        B = pred.shape[0]
        F = math.prod(pred.shape[1:])
        pf = pred.reshape(B, F)                       # keep input dtype; cast in-kernel
        tf_ = target.reshape(B, F)
        t2 = t.reshape(B, 1).astype(jnp.float32)
        CF = self.channels_logvar

        # 2 big streams: pred, target (in)
        tb, tfl = _choose_tiles(B, F, n_streams=2,
                                itemsize=jnp.dtype(pred.dtype).itemsize)
        nb, nf = B // tb, F // tfl
        itemsize = jnp.dtype(pred.dtype).itemsize
        cost = pl.CostEstimate(flops=3 * B * F + 4 * B * CF,
                               transcendentals=B * CF + B,
                               bytes_accessed=2 * B * F * itemsize + 8 * B)

        per_sample = pl.pallas_call(
            functools.partial(_loss_kernel, self.learn_logvar, 1.0 / float(F)),
            grid=(nb, nf),                            # reduction (F) axis last
            out_shape=jax.ShapeDtypeStruct((B, 1), jnp.float32),
            in_specs=[pl.BlockSpec((tb, 1), lambda i, j: (i, 0)),
                      pl.BlockSpec((tb, tfl), lambda i, j: (i, j)),
                      pl.BlockSpec((tb, tfl), lambda i, j: (i, j)),
                      pl.BlockSpec((1, CF), lambda i, j: (0, 0)),
                      pl.BlockSpec((1, CF), lambda i, j: (0, 0)),
                      pl.BlockSpec((1, CF), lambda i, j: (0, 0)),
                      pl.BlockSpec((1, 1), lambda i, j: (0, 0))],
            out_specs=pl.BlockSpec((tb, 1), lambda i, j: (i, 0)),
            scratch_shapes=[pltpu.VMEM((tb, 1), jnp.float32)],
            compiler_params=pltpu.CompilerParams(
                dimension_semantics=("parallel", "arbitrary")),
            cost_estimate=cost,
        )(t2, pf, tf_, self.freqs, self.phases, self.embed_w, self.embed_b)

        # Final mean over B (B floats) in plain JAX.
        return jnp.mean(per_sample)

    # ---- forward (mirrors torch FlowMatching.forward) --------------------------
    def forward(self, model, x, key, t=None, return_data=False):
        B = x.shape[0]
        kt, keps = jax.random.split(key)
        if t is None:
            t = jax.random.uniform(kt, (B,), jnp.float32)          # 'linear' sampling
        eps = jax.random.normal(keps, x.shape, jnp.float32)        # 'independent' prior

        xt, target = self.encode(x, t, eps)
        pred = model(xt, t)                                        # external model (glue)
        loss = self._loss(t, pred, target)

        loss_dict = {"fm_loss": loss}
        data_dict = {"eps": eps} if return_data else {}
        return loss, loss_dict, data_dict


# --------------------------------------------------------------------------
# Synthetic deterministic "model" (argument of forward) - plain-JAX glue:
# a 1x1 conv over channels plus additive time conditioning.
# --------------------------------------------------------------------------
def make_model(key, C):
    kw, kb = jax.random.split(key)
    Wm = 0.1 * jax.random.normal(kw, (C, C), jnp.float32)
    bm = 0.1 * jax.random.normal(kb, (C,), jnp.float32)

    def model(xt, t):
        out = jnp.einsum("bchw,oc->bohw", xt, Wm) + bm[None, :, None, None]
        return out + t[:, None, None, None]

    return model


# --------------------------------------------------------------------------
# Pure-JAX reference of FlowMatching.forward for verification
# --------------------------------------------------------------------------
def reference_forward(fm, model, x, t, eps):
    tb = t.reshape(-1, 1, 1, 1)
    xt = (1.0 - (1.0 - fm.sigma_min) * tb) * x + tb * eps
    target = eps - (1.0 - fm.sigma_min) * x
    pred = model(xt, t)
    val = jnp.mean((pred - target) ** 2, axis=(1, 2, 3))
    if fm.learn_logvar:
        emb = jnp.cos((fm.freqs * t[:, None] + fm.phases) * 2.0 * jnp.pi)
        logvar = jnp.sum(emb * fm.embed_w, axis=-1) + fm.embed_b[0, 0]
    else:
        logvar = jnp.zeros_like(val)
    return jnp.mean(val / jnp.exp(logvar) + logvar)


if __name__ == "__main__":
    key = jax.random.PRNGKey(0)
    k_param, k_model, k_data, k_fwd = jax.random.split(key, 4)

    B, C, H, W = 2, 4, 16, 16          # F = C*H*W = 1024 (multiple of 128)
    x = jax.random.normal(k_data, (B, C, H, W), jnp.float32)

    fm = FlowMatchingPallas(k_param, sigma_min=0.0, learn_logvar=True,
                            channels_logvar=64)
    model = make_model(k_model, C)

    loss, loss_dict, _ = fm.forward(model, x, k_fwd)
    loss = jax.block_until_ready(loss)

    # Verify against pure-JAX reference with identical t / eps draws.
    kt, keps = jax.random.split(k_fwd)
    t_ref = jax.random.uniform(kt, (B,), jnp.float32)
    eps_ref = jax.random.normal(keps, x.shape, jnp.float32)
    loss_ref = jax.block_until_ready(reference_forward(fm, model, x, t_ref, eps_ref))

    assert jnp.allclose(loss, loss_ref, rtol=1e-5, atol=1e-5), (loss, loss_ref)
    print("KERNEL_OK")
</pallas_src>

<mosaic_0001>
module attributes {stable_mosaic.version = 11 : i64} {
  func.func @_encode_kernel(%arg0: i32, %arg1: i32, %arg2: memref<2x1xf32, #tpu.memory_space<vmem>>, %arg3: memref<2x1024xf32, #tpu.memory_space<vmem>>, %arg4: memref<2x1024xf32, #tpu.memory_space<vmem>>, %arg5: memref<2x1024xf32, #tpu.memory_space<vmem>>, %arg6: memref<2x1024xf32, #tpu.memory_space<vmem>>) attributes {dimension_semantics = [#tpu.dimension_semantics<parallel>, #tpu.dimension_semantics<parallel>], iteration_bounds = array<i64: 1, 1>, scalar_prefetch = 0 : i64, scratch_operands = 0 : i64, tpu.core_type = #tpu.core_type<tc>, window_params = [{transform_indices = @transform_0, window_bounds = array<i64: 2, 1>}, {transform_indices = @transform_1, window_bounds = array<i64: 2, 1024>}, {transform_indices = @transform_2, window_bounds = array<i64: 2, 1024>}, {transform_indices = @transform_3, window_bounds = array<i64: 2, 1024>}, {transform_indices = @transform_4, window_bounds = array<i64: 2, 1024>}]} {
    %c0 = arith.constant 0 : index
    %c0_0 = arith.constant 0 : index
    %0 = vector.load %arg2[%c0, %c0_0] : memref<2x1xf32, #tpu.memory_space<vmem>>, vector<2x1xf32>
    %c0_1 = arith.constant 0 : index
    %c0_2 = arith.constant 0 : index
    %1 = vector.load %arg3[%c0_1, %c0_2] : memref<2x1024xf32, #tpu.memory_space<vmem>>, vector<2x1024xf32>
    %c0_3 = arith.constant 0 : index
    %c0_4 = arith.constant 0 : index
    %2 = vector.load %arg4[%c0_3, %c0_4] : memref<2x1024xf32, #tpu.memory_space<vmem>>, vector<2x1024xf32>
    %cst = arith.constant 1.000000e+00 : f32
    %3 = vector.broadcast %cst : f32 to vector<2x1xf32>
    %4 = arith.mulf %3, %0 : vector<2x1xf32>
    %cst_5 = arith.constant 1.000000e+00 : f32
    %5 = vector.broadcast %cst_5 : f32 to vector<2x1xf32>
    %6 = arith.subf %5, %4 : vector<2x1xf32>
    %7 = vector.broadcast %6 : vector<2x1xf32> to vector<2x1024xf32>
    %8 = arith.mulf %7, %1 : vector<2x1024xf32>
    %9 = vector.broadcast %0 : vector<2x1xf32> to vector<2x1024xf32>
    %10 = arith.mulf %9, %2 : vector<2x1024xf32>
    %11 = arith.addf %8, %10 : vector<2x1024xf32>
    %c0_6 = arith.constant 0 : index
    %c0_7 = arith.constant 0 : index
    %12 = vector.load %arg5[%c0_6, %c0_7] : memref<2x1024xf32, #tpu.memory_space<vmem>>, vector<2x1024xf32>
    tpu.vector_store %arg5[%c0_6, %c0_7], %11 {strides = array<i32>} : memref<2x1024xf32, #tpu.memory_space<vmem>>, vector<2x1024xf32>,
    %cst_8 = arith.constant 1.000000e+00 : f32
    %13 = vector.broadcast %cst_8 : f32 to vector<2x1024xf32>
    %14 = arith.mulf %13, %1 : vector<2x1024xf32>
    %15 = arith.subf %2, %14 : vector<2x1024xf32>
    %c0_9 = arith.constant 0 : index
    %c0_10 = arith.constant 0 : index
    %16 = vector.load %arg6[%c0_9, %c0_10] : memref<2x1024xf32, #tpu.memory_space<vmem>>, vector<2x1024xf32>
    tpu.vector_store %arg6[%c0_9, %c0_10], %15 {strides = array<i32>} : memref<2x1024xf32, #tpu.memory_space<vmem>>, vector<2x1024xf32>,
    return
  }
  func.func @transform_0(%arg0: i32, %arg1: i32) -> (i32, i32) {
    %c0_i32 = arith.constant 0 : i32
    %c0_i32_0 = arith.constant 0 : i32
    return %arg0, %c0_i32 : i32, i32
  }
  func.func @transform_1(%arg0: i32, %arg1: i32) -> (i32, i32) {
    %c0_i32 = arith.constant 0 : i32
    return %arg0, %arg1 : i32, i32
  }
  func.func @transform_2(%arg0: i32, %arg1: i32) -> (i32, i32) {
    %c0_i32 = arith.constant 0 : i32
    return %arg0, %arg1 : i32, i32
  }
  func.func @transform_3(%arg0: i32, %arg1: i32) -> (i32, i32) {
    %c0_i32 = arith.constant 0 : i32
    return %arg0, %arg1 : i32, i32
  }
  func.func @transform_4(%arg0: i32, %arg1: i32) -> (i32, i32) {
    %c0_i32 = arith.constant 0 : i32
    return %arg0, %arg1 : i32, i32
  }
}

</mosaic_0001>

<llo_original>
// kernel: tpu_custom_call.1
$region0: #{tpu_custom_call.1}
  #allocation0 [shape = 'u32[]', space=smem, size = 0x4, offset = 0x4, fixed_abs, tag = 'smem constant byte address 0x4 - core index']
  #allocation1 [shape = 'u32[72,128]{1,0:T(1,128)}', space=vmem, size = 0x9000, scoped, tag = 'internal scratch']
  %s0 = inlined_call_operand.vmem [shape: f32[2,1], index: 0, kind: input, shape index: {}]
  %s1 = inlined_call_operand.hbm [shape: f32[2,1024], index: 1, kind: input, shape index: {}]
  %s2 = inlined_call_operand.hbm [shape: f32[2,1024], index: 2, kind: input, shape index: {}]
  %s3 = inlined_call_operand.hbm [shape: f32[2,1024], index: 3, kind: output, shape index: {0}]
  %s4 = inlined_call_operand.hbm [shape: f32[2,1024], index: 4, kind: output, shape index: {1}]
  %5 = xla_tuple %s3, %s4
  %s6 = sld [smem:[#allocation0]]
  $region38: #{tpu_custom_call.1} parent=0
    _
  %s8 = ssub.s32 1, %s6
  %s9 = scalar_select 0, %s8, %s6
  $region1: #{tpu_custom_call.1} parent=0
    #allocation2 [shape = 'u8[8192]{0}', space=vmem, size = 0x2000, scoped, tag = 'input window, operand 1, single buffered']
    #allocation3 [shape = 's32[1]{0}', space=sflag, size = 0x4, scoped, tag = 'scoped memory for tpu_custom_call.1']
    #allocation4 [shape = 's32[1]{0}', space=sflag, size = 0x4, scoped, tag = 'scoped memory for tpu_custom_call.1']
    #allocation5 [shape = 'u8[8192]{0}', space=vmem, size = 0x2000, scoped, tag = 'input window, operand 2, single buffered']
    #allocation6 [shape = 's32[1]{0}', space=sflag, size = 0x4, scoped, tag = 'scoped memory for tpu_custom_call.1']
    #allocation7 [shape = 'u8[8192]{0}', space=vmem, size = 0x2000, scoped, tag = 'output window, operand 0, single buffered']
    #allocation8 [shape = 'u8[8192]{0}', space=vmem, size = 0x2000, scoped, tag = 'output window, operand 1, single buffered']
    #allocation9 [shape = 's32[1]{0}', space=sflag, size = 0x4, scoped, tag = 'scoped memory for tpu_custom_call.1']
    %10 = vsyncpa [#allocation3], 0
    %11 = vsyncpa [#allocation6], 0
    %12 = vsyncpa [#allocation4], 0
    %13 = vsyncpa [#allocation9], 0
    // Predicated region
    $region2: #{tpu_custom_call.1} parent=1 // pred_check
      _
    $region3: #{tpu_custom_call.1} parent=1 // pred_check_branch
      %15 = sbr.rel (0) target = $region5
    $region4: #{tpu_custom_call.1} parent=1 // pred_region
      _
    $region5: #{tpu_custom_call.1} parent=1 // pred_fallthru
      _
    // Predicated region
    $region6: #{tpu_custom_call.1} parent=1 // pred_check
      _
    $region7: #{tpu_custom_call.1} parent=1 // pred_check_branch
      %17 = sbr.rel (0) target = $region9
    $region8: #{tpu_custom_call.1} parent=1 // pred_region
      %19 = vsyncadd [#allocation3], 0
      %s21 = sshll.u32 %s1, 4
      %s22 = int_to_ptr.hbm [resolvable:$true] %s21
      %s23 = sshll.u32 [#allocation2], 4
      %s24 = int_to_ptr.vmem [resolvable:$true] %s23
      %26 = dma.hbm_to_vmem [thread:$0]  %s22, 256, %s24, [#allocation3]
    $region9: #{tpu_custom_call.1} parent=1 // pred_fallthru
      _
    // Predicated region
    $region10: #{tpu_custom_call.1} parent=1 // pred_check
      _
    $region11: #{tpu_custom_call.1} parent=1 // pred_check_branch
      %28 = sbr.rel (0) target = $region13
    $region12: #{tpu_custom_call.1} parent=1 // pred_region
      %30 = vsyncadd [#allocation6], 0
      %s32 = sshll.u32 %s2, 4
      %s33 = int_to_ptr.hbm [resolvable:$true] %s32
      %s34 = sshll.u32 [#allocation5], 4
      %s35 = int_to_ptr.vmem [resolvable:$true] %s34
      %37 = dma.hbm_to_vmem [thread:$0]  %s33, 256, %s35, [#allocation6]
    $region13: #{tpu_custom_call.1} parent=1 // pred_fallthru
      _
    // Predicated region
    $region14: #{tpu_custom_call.1} parent=1 // pred_check
      _
    $region15: #{tpu_custom_call.1} parent=1 // pred_check_branch
      %39 = sbr.rel (0) target = $region17
    $region16: #{tpu_custom_call.1} parent=1 // pred_region
      %41 = dma.done [#allocation3], 256
    $region17: #{tpu_custom_call.1} parent=1 // pred_fallthru
      _
    // Predicated region
    $region18: #{tpu_custom_call.1} parent=1 // pred_check
      _
    $region19: #{tpu_custom_call.1} parent=1 // pred_check_branch
      %43 = sbr.rel (0) target = $region21
    $region20: #{tpu_custom_call.1} parent=1 // pred_region
      %45 = dma.done [#allocation6], 256
    $region21: #{tpu_custom_call.1} parent=1 // pred_fallthru
      _
    %v46 = vld [vmem:[%s0] sm:$0x3]
    %v47 = vld [vmem:[#allocation2] sm:$0xff]
    %v48 = vld [vmem:[#allocation2 + $0x8] sm:$0xff]
    %v49 = vld [vmem:[#allocation5] sm:$0xff]
    %v50 = vld [vmem:[#allocation5 + $0x8] sm:$0xff]
    %v51 = vsub.f32 1.0, %v46
    %53 = vset.pattern.permute.xlu0 0
    %54 = vperm.xlu0 %53, %v51
    %v55 = vpop.permute.xlu0 %54
    %59 = vst [vmem:[#allocation1] ss:$4 sm:$0xff] %v47
    %s60 = scalar_lea.vmem [#allocation1], 32
    %61 = vst [vmem:[%s60] ss:$4 sm:$0xff] %v48
    %v62 = vld.sshfl [vmem:[#allocation1] sm:$0xff pattern:$0x73625140]
    %v63 = vld.sshfl [vmem:[#allocation1 + $0x8] sm:$0xff pattern:$0x73625140]
    %v64 = vld.sshfl [vmem:[#allocation1 + $0x10] sm:$0xff pattern:$0x73625140]
    %v65 = vld.sshfl [vmem:[#allocation1 + $0x18] sm:$0xff pattern:$0x73625140]
    %v66 = vld.sshfl [vmem:[#allocation1 + $0x20] sm:$0xff pattern:$0x73625140]
    %v67 = vld.sshfl [vmem:[#allocation1 + $0x28] sm:$0xff pattern:$0x73625140]
    %v68 = vld.sshfl [vmem:[#allocation1 + $0x30] sm:$0xff pattern:$0x73625140]
    %v69 = vld.sshfl [vmem:[#allocation1 + $0x38] sm:$0xff pattern:$0x73625140]
    %v78 = vmul.f32 %v55, %v62
    %v79 = vmul.f32 %v55, %v63
    %v80 = vmul.f32 %v55, %v64
    %v81 = vmul.f32 %v55, %v65
    %v82 = vmul.f32 %v55, %v66
    %v83 = vmul.f32 %v55, %v67
    %v84 = vmul.f32 %v55, %v68
    %v85 = vmul.f32 %v55, %v69
    %87 = vset.pattern.permute.xlu0 0
    %88 = vperm.xlu0 %87, %v46
    %v89 = vpop.permute.xlu0 %88
    %93 = vst [vmem:[#allocation1] ss:$4 sm:$0xff] %v49
    %s94 = scalar_lea.vmem [#allocation1], 32
    %95 = vst [vmem:[%s94] ss:$4 sm:$0xff] %v50
    %v96 = vld.sshfl [vmem:[#allocation1] sm:$0xff pattern:$0x73625140]
    %v97 = vld.sshfl [vmem:[#allocation1 + $0x8] sm:$0xff pattern:$0x73625140]
    %v98 = vld.sshfl [vmem:[#allocation1 + $0x10] sm:$0xff pattern:$0x73625140]
    %v99 = vld.sshfl [vmem:[#allocation1 + $0x18] sm:$0xff pattern:$0x73625140]
    %v100 = vld.sshfl [vmem:[#allocation1 + $0x20] sm:$0xff pattern:$0x73625140]
    %v101 = vld.sshfl [vmem:[#allocation1 + $0x28] sm:$0xff pattern:$0x73625140]
    %v102 = vld.sshfl [vmem:[#allocation1 + $0x30] sm:$0xff pattern:$0x73625140]
    %v103 = vld.sshfl [vmem:[#allocation1 + $0x38] sm:$0xff pattern:$0x73625140]
    %v112 = vmul.f32 %v89, %v96
    %v113 = vmul.f32 %v89, %v97
    %v114 = vmul.f32 %v89, %v98
    %v115 = vmul.f32 %v89, %v99
    %v116 = vmul.f32 %v89, %v100
    %v117 = vmul.f32 %v89, %v101
    %v118 = vmul.f32 %v89, %v102
    %v119 = vmul.f32 %v89, %v103
    %v120 = vadd.f32 %v78, %v112
    %v121 = vadd.f32 %v79, %v113
    %v122 = vadd.f32 %v80, %v114
    %v123 = vadd.f32 %v81, %v115
    %v124 = vadd.f32 %v82, %v116
    %v125 = vadd.f32 %v83, %v117
    %v126 = vadd.f32 %v84, %v118
    %v127 = vadd.f32 %v85, %v119
    %v136 = vrot.slane %v121, 6
    %v137 = vrot.slane %v122, 4
    %v138 = vrot.slane %v123, 2
    %v139 = vrot.slane %v125, 6
    %v140 = vrot.slane %v126, 4
    %v141 = vrot.slane %v127, 2
    %vm142 = vcmask 1041408
    %v143 = vsel %vm142, %v120, %v136
    %vm144 = vcmask 1045508
    %v145 = vsel %vm144, %v137, %v138
    %vm146 = vcmask 1043456
    %v147 = vsel %vm146, %v143, %v145
    %v148 = vsel %vm142, %v124, %v139
    %v149 = vsel %vm144, %v140, %v141
    %v150 = vsel %vm146, %v148, %v149
    %153 = vst [vmem:[#allocation7] sm:$0xff] %v147
    %154 = vst [vmem:[#allocation7 + $0x8] sm:$0xff] %v150
    %v155 = vsub.f32 %v49, %v47
    %v156 = vsub.f32 %v50, %v48
    %157 = vst [vmem:[#allocation8] sm:$0xff] %v155
    %158 = vst [vmem:[#allocation8 + $0x8] sm:$0xff] %v156
    // Predicated region
    $region22: #{tpu_custom_call.1} parent=1 // pred_check
      _
    $region23: #{tpu_custom_call.1} parent=1 // pred_check_branch
      %160 = sbr.rel (0) target = $region25
    $region24: #{tpu_custom_call.1} parent=1 // pred_region
      %162 = vsyncadd [#allocation4], 0
      %s164 = sshll.u32 [#allocation7], 4
      %s165 = int_to_ptr.vmem [resolvable:$true] %s164
      %s166 = sshll.u32 %s3, 4
      %s167 = int_to_ptr.hbm [resolvable:$true] %s166
      %169 = dma.vmem_to_hbm [thread:$0]  %s165, 256, %s167, [#allocation4]
    $region25: #{tpu_custom_call.1} parent=1 // pred_fallthru
      _
    // Predicated region
    $region26: #{tpu_custom_call.1} parent=1 // pred_check
      _
    $region27: #{tpu_custom_call.1} parent=1 // pred_check_branch
      %171 = sbr.rel (0) target = $region29
    $region28: #{tpu_custom_call.1} parent=1 // pred_region
      %173 = vsyncadd [#allocation9], 0
      %s175 = sshll.u32 [#allocation8], 4
      %s176 = int_to_ptr.vmem [resolvable:$true] %s175
      %s177 = sshll.u32 %s4, 4
      %s178 = int_to_ptr.hbm [resolvable:$true] %s177
      %180 = dma.vmem_to_hbm [thread:$0]  %s176, 256, %s178, [#allocation9]
    $region29: #{tpu_custom_call.1} parent=1 // pred_fallthru
      _
    // Predicated region
    $region30: #{tpu_custom_call.1} parent=1 // pred_check
      _
    $region31: #{tpu_custom_call.1} parent=1 // pred_check_branch
      %182 = sbr.rel (0) target = $region33
    $region32: #{tpu_custom_call.1} parent=1 // pred_region
      %184 = dma.done [#allocation4], 256
    $region33: #{tpu_custom_call.1} parent=1 // pred_fallthru
      _
    // Predicated region
    $region34: #{tpu_custom_call.1} parent=1 // pred_check
      _
    $region35: #{tpu_custom_call.1} parent=1 // pred_check_branch
      %186 = sbr.rel (0) target = $region37
    $region36: #{tpu_custom_call.1} parent=1 // pred_region
      %188 = dma.done [#allocation9], 256
    $region37: #{tpu_custom_call.1} parent=1 // pred_fallthru
      _
    %189 = vsyncpa [#allocation3], 1
    %190 = vsyncpa [#allocation6], 1
    %191 = vsyncpa [#allocation4], 1
    %192 = vsyncpa [#allocation9], 1

</llo_original>
